<compile_context>
chip_gen: v5e
topology: v5e:2x2
jax: 0.10.0
libtpu: 0.0.40
codegen_flags: <defaults>
</compile_context>

<pallas_src>
import functools
import numpy as np
import jax
import jax.numpy as jnp
from jax.experimental import pallas as pl
from jax.experimental.pallas import tpu as pltpu


# ---------------------------------------------------------------------------
# Kernel 1: fused im2col-conv + bias + ReLU + max-pool(L) + power transform
#           + masked LayerNorm.  Operates on one batch tile of TB sentences.
# ---------------------------------------------------------------------------
def _encoder_kernel(x_ref, w_ref, p_ref, out_ref, *, h_real, seq_len):
    # x   : (TB*L, K3) bf16  im2col slab (K3 = 3*D, unpadded contraction)
    # w   : (K3, HP)   bf16  conv weight, (k,d) flattened, HP lane-padded
    # p   : (8, HP)    f32   packed params: rows = [bias, gamma, beta, mask, 0..]
    # out : (TB, HP)   f32   encoded sentence features (padded lanes == 0)
    TB, HP = out_ref.shape

    bias = p_ref[0:1, :]
    gamma = p_ref[1:2, :]
    beta = p_ref[2:3, :]
    mask = p_ref[3:4, :]

    # Single MXU matmul, f32 accumulation (compiler pads K inside vregs).
    h = jnp.dot(x_ref[...], w_ref[...], preferred_element_type=jnp.float32)
    h = jnp.maximum(h + bias, 0.0)                             # bias + ReLU

    # MaxPool1d(L).  TODO(synk): if the bundle dump shows a relayout copy here
    # (L not a sublane multiple), switch to a strided jnp.maximum tree.
    pooled = jnp.max(h.reshape(TB, seq_len, HP), axis=1)

    pt = jnp.sqrt(pooled + 1e-6)                               # power transform (beta=0.5)

    # LayerNorm over the REAL hidden channels only (lanes >= h_real are pad).
    pt = pt * mask
    inv_h = 1.0 / float(h_real)
    mu = jnp.sum(pt, axis=-1, keepdims=True) * inv_h
    cen = (pt - mu) * mask
    var = jnp.sum(cen * cen, axis=-1, keepdims=True) * inv_h
    ln = cen * jax.lax.rsqrt(var + 1e-5)                       # EUP rsqrt
    out_ref[...] = ln * gamma + beta                           # pad lanes -> exactly 0


def _choose_tb(B, L, K3, HP):
    """Largest encoder batch tile (multiple of 8, <=256) fitting a 20 MiB budget."""
    vmem_budget = 20 * 1024 * 1024          # conservative vs v7x 32 MiB scoped default
    weight_bytes = 2 * (K3 * HP * 2 + 8 * HP * 4)          # double-buffered weight+params
    per_sentence = 2 * (L * K3 * 2 + HP * 4)               # 2 bufs x (bf16 slab + f32 out)
    cap = max(1, (vmem_budget - weight_bytes) // per_sentence)
    tb = min(int(cap), 256)
    tb = max(8, (tb // 8) * 8)
    tb = min(tb, 8 * pl.cdiv(B, 8))         # don't tile wider than the (8-rounded) batch
    return int(tb)


def encode_sentences(x_emb, conv_w, conv_b, ln_g, ln_b):
    """x_emb: (B, L, D) f32 -> (B, HP) f32 features, HP = pad(H, 128)."""
    B, L, D = x_emb.shape
    H = conv_w.shape[-1]
    K3 = 3 * D
    HP = 128 * pl.cdiv(H, 128)              # hidden padded to lane-dense 128
    tb = _choose_tb(B, L, K3, HP)
    Bp = tb * pl.cdiv(B, tb)

    # ---- im2col in the wrapper: lane-dense 2-D slab, NO contraction padding ----
    xp = jnp.pad(x_emb, ((0, Bp - B), (1, 1), (0, 0)))         # conv padding=1 + batch pad
    slab = jnp.concatenate([xp[:, 0:L, :], xp[:, 1:L + 1, :], xp[:, 2:L + 2, :]],
                           axis=-1)                            # (Bp, L, 3D)
    slab = slab.reshape(Bp * L, K3).astype(jnp.bfloat16)       # bf16 MXU inputs

    w2 = conv_w.reshape(K3, H)
    w2 = jnp.pad(w2, ((0, 0), (0, HP - H))).astype(jnp.bfloat16)

    # Packed per-channel params; padded lanes stay exactly 0 (LayerNorm/proto rely on it).
    pk = jnp.zeros((8, HP), jnp.float32)
    pk = pk.at[0, :H].set(conv_b.reshape(-1))
    pk = pk.at[1, :H].set(ln_g.reshape(-1))
    pk = pk.at[2, :H].set(ln_b.reshape(-1))
    pk = pk.at[3, :H].set(1.0)                                 # lane mask

    grid = (Bp // tb,)
    out = pl.pallas_call(
        functools.partial(_encoder_kernel, h_real=H, seq_len=L),
        out_shape=jax.ShapeDtypeStruct((Bp, HP), jnp.float32),
        grid=grid,
        in_specs=[
            pl.BlockSpec((tb * L, K3), lambda i: (i, 0)),      # activations: tiled over B
            pl.BlockSpec((K3, HP), lambda i: (0, 0)),          # weights stay resident
            pl.BlockSpec((8, HP), lambda i: (0, 0)),           # packed params
        ],
        out_specs=pl.BlockSpec((tb, HP), lambda i: (i, 0)),
        compiler_params=pltpu.CompilerParams(
            dimension_semantics=("parallel",)),                # 2-TC split on v7x
    )(slab, w2, pk)
    return out[:B]                                             # (B, HP)


# ---------------------------------------------------------------------------
# Kernel 2: prototypes (mean over K) + MXU squared-euclid logits + NA column.
#           Single grid step, lane-dense (NP=128) output.
# ---------------------------------------------------------------------------
def _proto_dist_kernel(s_ref, q_ref, out_ref, *, n_cls):
    # s  : (B, N, K, HP) support features (padded lanes are 0)
    # q  : (B, NQ, HP)   query features
    # out: (B, NQ, NP)   lane-dense logits; lane n_cls = min(logits) - 1
    NP = out_ref.shape[-1]

    proto = jnp.mean(s_ref[...], axis=2)                       # (B, N, HP)
    q = q_ref[...]                                             # (B, NQ, HP)

    # -||q - p||^2 = 2 q.p - ||q||^2 - ||p||^2  (MXU instead of VPU broadcast)
    qp = jnp.einsum('bqh,bnh->bqn', q, proto,
                    preferred_element_type=jnp.float32)        # (B, NQ, N)
    qn = jnp.sum(q * q, axis=-1, keepdims=True)                # (B, NQ, 1)
    ones = jnp.ones((proto.shape[0], 1, proto.shape[-1]), jnp.float32)
    pn = jnp.einsum('bxh,bnh->bxn', ones, proto * proto,
                    preferred_element_type=jnp.float32)        # (B, 1, N)

    logits = 2.0 * qp - qn - pn                                # (B, NQ, N)
    minn = jnp.min(logits, axis=-1, keepdims=True)             # (B, NQ, 1)

    # Lane-dense single full store; wrapper slices [..., :N+1].
    body = jnp.concatenate([logits, minn - 1.0], axis=-1)      # (B, NQ, N+1)
    out_ref[...] = jnp.pad(body, ((0, 0), (0, 0), (0, NP - (n_cls + 1))))


def proto_logits(support_feat, query_feat, N, K):
    HP = support_feat.shape[-1]
    s = support_feat.reshape(-1, N, K, HP)
    B = s.shape[0]
    assert query_feat.shape[0] % B == 0, "query batch must be divisible by task batch"
    NQ = query_feat.shape[0] // B
    q = query_feat.reshape(B, NQ, HP)
    NP = 128 * pl.cdiv(N + 1, 128)

    out = pl.pallas_call(
        functools.partial(_proto_dist_kernel, n_cls=N),
        out_shape=jax.ShapeDtypeStruct((B, NQ, NP), jnp.float32),
        grid=(1,),                                             # whole few-shot batch: one step
        in_specs=[
            pl.BlockSpec((B, N, K, HP), lambda i: (0, 0, 0, 0)),
            pl.BlockSpec((B, NQ, HP), lambda i: (0, 0, 0)),
        ],
        out_specs=pl.BlockSpec((B, NQ, NP), lambda i: (0, 0, 0)),
        compiler_params=pltpu.CompilerParams(
            dimension_semantics=("arbitrary",)),
    )(s, q)
    return out[:, :, :N + 1]                                   # (B, NQ, N+1)


# ---------------------------------------------------------------------------
# Glue: embedding lookup + full forward
# ---------------------------------------------------------------------------
def embed(word, pos1, pos2, word_mat, pos1_mat, pos2_mat):
    w = word_mat[word]       # (B, L, word_dim)
    p1 = pos1_mat[pos1]      # (B, L, pos_dim)
    p2 = pos2_mat[pos2]      # (B, L, pos_dim)
    return jnp.concatenate([w, p1, p2], axis=-1).astype(jnp.float32)


def pt_forward(params, support_tok, query_tok, N, K, Q, na_rate):
    s_emb = embed(*support_tok, params["word_mat"], params["pos1_mat"], params["pos2_mat"])
    q_emb = embed(*query_tok, params["word_mat"], params["pos1_mat"], params["pos2_mat"])
    B_S = s_emb.shape[0]

    # One encoder launch for support + query (bigger M, single weight DMA).
    x_emb = jnp.concatenate([s_emb, q_emb], axis=0)
    feats = encode_sentences(x_emb, params["conv_w"], params["conv_b"],
                             params["ln_g"], params["ln_b"])
    s_feat, q_feat = feats[:B_S], feats[B_S:]

    logits = proto_logits(s_feat, q_feat, N, K)              # (B, NQ, N+1)
    pred = jnp.argmax(logits.reshape(-1, N + 1), axis=1)     # (B*NQ,)
    return logits, pred, 0


# ---------------------------------------------------------------------------
# Plain-JAX reference (same math, same bf16 conv-input policy) for correctness
# ---------------------------------------------------------------------------
def _ref_forward(params, support_tok, query_tok, N, K, Q, na_rate):
    def enc(emb):
        B, L, D = emb.shape
        xp = jnp.pad(emb, ((0, 0), (1, 1), (0, 0)))
        slab = jnp.concatenate([xp[:, k:k + L, :] for k in range(3)],
                               axis=-1).astype(jnp.bfloat16)
        w2 = params["conv_w"].reshape(3 * D, -1).astype(jnp.bfloat16)
        h = jnp.einsum("blk,kh->blh", slab, w2,
                       preferred_element_type=jnp.float32)
        h = jnp.maximum(h + params["conv_b"][0], 0.0)
        pooled = jnp.max(h, axis=1)
        pt = jnp.sqrt(pooled + 1e-6)
        mu = pt.mean(-1, keepdims=True)
        var = ((pt - mu) ** 2).mean(-1, keepdims=True)
        return (pt - mu) * jax.lax.rsqrt(var + 1e-5) * params["ln_g"][0] + params["ln_b"][0]

    s_feat = enc(embed(*support_tok, params["word_mat"], params["pos1_mat"], params["pos2_mat"]))
    q_feat = enc(embed(*query_tok, params["word_mat"], params["pos1_mat"], params["pos2_mat"]))
    H = s_feat.shape[-1]
    s = s_feat.reshape(-1, N, K, H)
    B = s.shape[0]
    q = q_feat.reshape(B, -1, H)
    proto = s.mean(2)                                        # (B, N, H)
    logits = -jnp.sum((q[:, :, None, :] - proto[:, None, :, :]) ** 2, axis=3)
    minn = logits.min(-1, keepdims=True)
    logits = jnp.concatenate([logits, minn - 1.0], axis=2)
    pred = jnp.argmax(logits.reshape(-1, N + 1), axis=1)
    return logits, pred, 0


if __name__ == "__main__":
    # Small shapes consistent with the module's forward.
    N, K, Q, NA_RATE = 2, 2, 2, 1
    B_OUT = 1                       # outer (task) batch
    L = 16                          # max_length
    WORD_DIM, POS_DIM = 8, 4
    D = WORD_DIM + 2 * POS_DIM      # 16
    H = 32                          # hidden_size
    V = 20                          # vocab size

    B_S = B_OUT * N * K                   # 4 support sentences
    B_Q = B_OUT * (N * Q + NA_RATE * Q)   # 6 query sentences

    key = jax.random.PRNGKey(0)
    ks = jax.random.split(key, 10)

    params = {
        "word_mat": jax.random.normal(ks[0], (V, WORD_DIM), jnp.float32) * 0.5,
        "pos1_mat": jax.random.normal(ks[1], (2 * L, POS_DIM), jnp.float32) * 0.5,
        "pos2_mat": jax.random.normal(ks[2], (2 * L, POS_DIM), jnp.float32) * 0.5,
        "conv_w": jax.random.normal(ks[3], (3, D, H), jnp.float32) * (1.0 / np.sqrt(3 * D)),
        "conv_b": jax.random.normal(ks[4], (1, H), jnp.float32) * 0.01,
        "ln_g": jnp.ones((1, H), jnp.float32),
        "ln_b": jnp.zeros((1, H), jnp.float32),
    }

    support_tok = (
        jax.random.randint(ks[5], (B_S, L), 0, V),
        jax.random.randint(ks[6], (B_S, L), 0, 2 * L),
        jax.random.randint(ks[7], (B_S, L), 0, 2 * L),
    )
    query_tok = (
        jax.random.randint(ks[8], (B_Q, L), 0, V),
        jax.random.randint(ks[9], (B_Q, L), 0, 2 * L),
        jax.random.randint(ks[5], (B_Q, L), 0, 2 * L),
    )

    logits, pred, _ = pt_forward(params, support_tok, query_tok, N, K, Q, NA_RATE)
    logits = jax.block_until_ready(logits)
    pred = jax.block_until_ready(pred)

    ref_logits, ref_pred, _ = _ref_forward(params, support_tok, query_tok, N, K, Q, NA_RATE)
    np.testing.assert_allclose(np.asarray(logits), np.asarray(ref_logits),
                               rtol=5e-3, atol=5e-3)
    np.testing.assert_array_equal(np.asarray(pred), np.asarray(ref_pred))

    print("KERNEL_OK")
</pallas_src>

<mosaic_0001>
module attributes {stable_mosaic.version = 11 : i64} {
  func.func @_encoder_kernel(%arg0: i32, %arg1: memref<256x48xbf16, #tpu.memory_space<vmem>>, %arg2: memref<48x128xbf16, #tpu.memory_space<vmem>>, %arg3: memref<8x128xf32, #tpu.memory_space<vmem>>, %arg4: memref<16x128xf32, #tpu.memory_space<vmem>>) attributes {dimension_semantics = [#tpu.dimension_semantics<parallel>], iteration_bounds = array<i64: 1>, scalar_prefetch = 0 : i64, scratch_operands = 0 : i64, tpu.core_type = #tpu.core_type<tc>, window_params = [{transform_indices = @transform_0, window_bounds = array<i64: 256, 48>}, {pipeline_mode = #tpu.pipeline_mode<synchronous>, transform_indices = @transform_1, window_bounds = array<i64: 48, 128>}, {pipeline_mode = #tpu.pipeline_mode<synchronous>, transform_indices = @transform_2, window_bounds = array<i64: 8, 128>}, {transform_indices = @transform_3, window_bounds = array<i64: 16, 128>}]} {
    %c0 = arith.constant 0 : index
    %c0_0 = arith.constant 0 : index
    %0 = vector.load %arg3[%c0, %c0_0] : memref<8x128xf32, #tpu.memory_space<vmem>>, vector<1x128xf32>
    %c1 = arith.constant 1 : index
    %c0_1 = arith.constant 0 : index
    %1 = vector.load %arg3[%c1, %c0_1] : memref<8x128xf32, #tpu.memory_space<vmem>>, vector<1x128xf32>
    %c2 = arith.constant 2 : index
    %c0_2 = arith.constant 0 : index
    %2 = vector.load %arg3[%c2, %c0_2] : memref<8x128xf32, #tpu.memory_space<vmem>>, vector<1x128xf32>
    %c3 = arith.constant 3 : index
    %c0_3 = arith.constant 0 : index
    %3 = vector.load %arg3[%c3, %c0_3] : memref<8x128xf32, #tpu.memory_space<vmem>>, vector<1x128xf32>
    %c0_4 = arith.constant 0 : index
    %c0_5 = arith.constant 0 : index
    %4 = vector.load %arg1[%c0_4, %c0_5] : memref<256x48xbf16, #tpu.memory_space<vmem>>, vector<256x48xbf16>
    %c0_6 = arith.constant 0 : index
    %c0_7 = arith.constant 0 : index
    %5 = vector.load %arg2[%c0_6, %c0_7] : memref<48x128xbf16, #tpu.memory_space<vmem>>, vector<48x128xbf16>
    %cst = arith.constant dense<0.000000e+00> : vector<256x128xf32>
    %6 = tpu.matmul %4, %5, %cst {dimension_numbers = #tpu.dot_dimension_numbers<[1], [0], [0], [1], [0, 0, 1, 1], [], []>} : vector<256x48xbf16>, vector<48x128xbf16>, vector<256x128xf32> -> vector<256x128xf32>
    %7 = vector.broadcast %0 : vector<1x128xf32> to vector<256x128xf32>
    %8 = arith.addf %6, %7 : vector<256x128xf32>
    %cst_8 = arith.constant 0.000000e+00 : f32
    %9 = vector.broadcast %cst_8 : f32 to vector<256x128xf32>
    %10 = arith.maximumf %8, %9 : vector<256x128xf32>
    %11 = vector.shape_cast %10 : vector<256x128xf32> to vector<16x16x128xf32>
    %cst_9 = arith.constant dense<0xFF800000> : vector<16x128xf32>
    %12 = vector.multi_reduction <maximumf>, %11, %cst_9 [1] : vector<16x16x128xf32> to vector<16x128xf32>
    %cst_10 = arith.constant 9.99999997E-7 : f32
    %13 = vector.broadcast %cst_10 : f32 to vector<16x128xf32>
    %14 = arith.addf %12, %13 : vector<16x128xf32>
    %15 = math.sqrt %14 : vector<16x128xf32>
    %16 = vector.broadcast %3 : vector<1x128xf32> to vector<16x128xf32>
    %17 = arith.mulf %15, %16 : vector<16x128xf32>
    %cst_11 = arith.constant dense<0.000000e+00> : vector<16xf32>
    %18 = vector.multi_reduction <add>, %17, %cst_11 [1] : vector<16x128xf32> to vector<16xf32>
    %19 = vector.shape_cast %18 : vector<16xf32> to vector<16x1xf32>
    %cst_12 = arith.constant 3.125000e-02 : f32
    %20 = vector.broadcast %cst_12 : f32 to vector<16x1xf32>
    %21 = arith.mulf %19, %20 : vector<16x1xf32>
    %22 = vector.broadcast %21 : vector<16x1xf32> to vector<16x128xf32>
    %23 = arith.subf %17, %22 : vector<16x128xf32>
    %24 = vector.broadcast %3 : vector<1x128xf32> to vector<16x128xf32>
    %25 = arith.mulf %23, %24 : vector<16x128xf32>
    %26 = arith.mulf %25, %25 : vector<16x128xf32>
    %cst_13 = arith.constant dense<0.000000e+00> : vector<16xf32>
    %27 = vector.multi_reduction <add>, %26, %cst_13 [1] : vector<16x128xf32> to vector<16xf32>
    %28 = vector.shape_cast %27 : vector<16xf32> to vector<16x1xf32>
    %cst_14 = arith.constant 3.125000e-02 : f32
    %29 = vector.broadcast %cst_14 : f32 to vector<16x1xf32>
    %30 = arith.mulf %28, %29 : vector<16x1xf32>
    %cst_15 = arith.constant 9.99999974E-6 : f32
    %31 = vector.broadcast %cst_15 : f32 to vector<16x1xf32>
    %32 = arith.addf %30, %31 : vector<16x1xf32>
    %33 = math.rsqrt %32 : vector<16x1xf32>
    %34 = vector.broadcast %33 : vector<16x1xf32> to vector<16x128xf32>
    %35 = arith.mulf %25, %34 : vector<16x128xf32>
    %36 = vector.broadcast %1 : vector<1x128xf32> to vector<16x128xf32>
    %37 = arith.mulf %35, %36 : vector<16x128xf32>
    %38 = vector.broadcast %2 : vector<1x128xf32> to vector<16x128xf32>
    %39 = arith.addf %37, %38 : vector<16x128xf32>
    %c0_16 = arith.constant 0 : index
    %c0_17 = arith.constant 0 : index
    %40 = vector.load %arg4[%c0_16, %c0_17] : memref<16x128xf32, #tpu.memory_space<vmem>>, vector<16x128xf32>
    tpu.vector_store %arg4[%c0_16, %c0_17], %39 {strides = array<i32>} : memref<16x128xf32, #tpu.memory_space<vmem>>, vector<16x128xf32>,
    return
  }
  func.func @transform_0(%arg0: i32) -> (i32, i32) {
    %c0_i32 = arith.constant 0 : i32
    %c0_i32_0 = arith.constant 0 : i32
    return %arg0, %c0_i32 : i32, i32
  }
  func.func @transform_1(%arg0: i32) -> (i32, i32) {
    %c0_i32 = arith.constant 0 : i32
    %c0_i32_0 = arith.constant 0 : i32
    %c0_i32_1 = arith.constant 0 : i32
    return %c0_i32, %c0_i32_0 : i32, i32
  }
  func.func @transform_2(%arg0: i32) -> (i32, i32) {
    %c0_i32 = arith.constant 0 : i32
    %c0_i32_0 = arith.constant 0 : i32
    %c0_i32_1 = arith.constant 0 : i32
    return %c0_i32, %c0_i32_0 : i32, i32
  }
  func.func @transform_3(%arg0: i32) -> (i32, i32) {
    %c0_i32 = arith.constant 0 : i32
    %c0_i32_0 = arith.constant 0 : i32
    return %arg0, %c0_i32 : i32, i32
  }
}

</mosaic_0001>

<llo_original>
// kernel: tpu_custom_call.1
$region0: #{tpu_custom_call.1}
  #allocation0 [shape = 'u32[]', space=smem, size = 0x4, offset = 0x4, fixed_abs, tag = 'smem constant byte address 0x4 - core index']
  #allocation1 [shape = 'u32[72,128]{1,0:T(1,128)}', space=vmem, size = 0x9000, scoped, tag = 'internal scratch']
  %s0 = inlined_call_operand.vmem [shape: bf16[256,48], index: 0, kind: input, shape index: {}]
  %s1 = inlined_call_operand.vmem [shape: bf16[48,128], index: 1, kind: input, shape index: {}]
  %s2 = inlined_call_operand.vmem [shape: f32[8,128], index: 2, kind: input, shape index: {}]
  %s3 = inlined_call_operand.hbm [shape: f32[16,128], index: 3, kind: output, shape index: {}]
  %s4 = sld [smem:[#allocation0]]
  $region22: #{tpu_custom_call.1} parent=0
    _
  %s6 = ssub.s32 1, %s4
  %s7 = scalar_select 0, %s6, %s4
  $region1: #{tpu_custom_call.1} parent=0
    #allocation2 [shape = 'u8[8192]{0}', space=vmem, size = 0x2000, scoped, tag = 'output window, operand 0, single buffered']
    #allocation3 [shape = 's32[1]{0}', space=sflag, size = 0x4, scoped, tag = 'scoped memory for tpu_custom_call.1']
    %8 = vsyncpa [#allocation3], 0
    // Predicated region
    $region2: #{tpu_custom_call.1} parent=1 // pred_check
      _
    $region3: #{tpu_custom_call.1} parent=1 // pred_check_branch
      %10 = sbr.rel (0) target = $region5
    $region4: #{tpu_custom_call.1} parent=1 // pred_region
      _
    $region5: #{tpu_custom_call.1} parent=1 // pred_fallthru
      _
    // Predicated region
    $region6: #{tpu_custom_call.1} parent=1 // pred_check
      _
    $region7: #{tpu_custom_call.1} parent=1 // pred_check_branch
      %12 = sbr.rel (0) target = $region9
    $region8: #{tpu_custom_call.1} parent=1 // pred_region
      _
    $region9: #{tpu_custom_call.1} parent=1 // pred_fallthru
      _
    // Predicated region
    $region10: #{tpu_custom_call.1} parent=1 // pred_check
      _
    $region11: #{tpu_custom_call.1} parent=1 // pred_check_branch
      %14 = sbr.rel (0) target = $region13
    $region12: #{tpu_custom_call.1} parent=1 // pred_region
      _
    $region13: #{tpu_custom_call.1} parent=1 // pred_fallthru
      _
    %v16 = vld [vmem:[%s2] sm:$0x1]
    %v17 = vld [vmem:[%s2 + $0x1] sm:$0x1]
    %v18 = vld [vmem:[%s2 + $0x2] sm:$0x1]
    %v19 = vld [vmem:[%s2 + $0x3] sm:$0x1]
    %v20 = vld [vmem:[%s0] sm:$0xf]
    %v21 = vld [vmem:[%s0 + $0x4] sm:$0xf]
    %v22 = vld [vmem:[%s0 + $0x8] sm:$0xf]
    %v23 = vld [vmem:[%s0 + $0xc] sm:$0xf]
    %v24 = vld [vmem:[%s0 + $0x10] sm:$0xf]
    %v25 = vld [vmem:[%s0 + $0x14] sm:$0xf]
    %v26 = vld [vmem:[%s0 + $0x18] sm:$0xf]
    %v27 = vld [vmem:[%s0 + $0x1c] sm:$0xf]
    %v28 = vld [vmem:[%s0 + $0x20] sm:$0xf]
    %v29 = vld [vmem:[%s0 + $0x24] sm:$0xf]
    %v30 = vld [vmem:[%s0 + $0x28] sm:$0xf]
    %v31 = vld [vmem:[%s0 + $0x2c] sm:$0xf]
    %v32 = vld [vmem:[%s0 + $0x30] sm:$0xf]
    %v33 = vld [vmem:[%s0 + $0x34] sm:$0xf]
    %v34 = vld [vmem:[%s0 + $0x38] sm:$0xf]
    %v35 = vld [vmem:[%s0 + $0x3c] sm:$0xf]
    %v36 = vld [vmem:[%s0 + $0x40] sm:$0xf]
    %v37 = vld [vmem:[%s0 + $0x44] sm:$0xf]
    %v38 = vld [vmem:[%s0 + $0x48] sm:$0xf]
    %v39 = vld [vmem:[%s0 + $0x4c] sm:$0xf]
    %v40 = vld [vmem:[%s0 + $0x50] sm:$0xf]
    %v41 = vld [vmem:[%s0 + $0x54] sm:$0xf]
    %v42 = vld [vmem:[%s0 + $0x58] sm:$0xf]
    %v43 = vld [vmem:[%s0 + $0x5c] sm:$0xf]
    %v44 = vld [vmem:[%s0 + $0x60] sm:$0xf]
    %v45 = vld [vmem:[%s0 + $0x64] sm:$0xf]
    %v46 = vld [vmem:[%s0 + $0x68] sm:$0xf]
    %v47 = vld [vmem:[%s0 + $0x6c] sm:$0xf]
    %v48 = vld [vmem:[%s0 + $0x70] sm:$0xf]
    %v49 = vld [vmem:[%s0 + $0x74] sm:$0xf]
    %v50 = vld [vmem:[%s0 + $0x78] sm:$0xf]
    %v51 = vld [vmem:[%s0 + $0x7c] sm:$0xf]
    %v52 = vld [vmem:[%s1] sm:$0xf]
    %v53 = vld [vmem:[%s1 + $0x4] sm:$0xf]
    %v54 = vld [vmem:[%s1 + $0x8] sm:$0xf]
    %v55 = vld [vmem:[%s1 + $0xc] sm:$0xf]
    %v56 = vld [vmem:[%s1 + $0x10] sm:$0xf]
    %v57 = vld [vmem:[%s1 + $0x14] sm:$0xf]
    %v58 = vperm.slane %v16, 0
    %v91 = vunpack.c.l.b16 %v20
    %v92 = vunpack.c.l.b16 %v21
    %v93 = vunpack.c.l.b16 %v22
    %v94 = vunpack.c.l.b16 %v23
    %v95 = vunpack.c.l.b16 %v24
    %v96 = vunpack.c.l.b16 %v25
    %v97 = vunpack.c.l.b16 %v26
    %v98 = vunpack.c.l.b16 %v27
    %v99 = vunpack.c.l.b16 %v28
    %v100 = vunpack.c.l.b16 %v29
    %v101 = vunpack.c.l.b16 %v30
    %v102 = vunpack.c.l.b16 %v31
    %v103 = vunpack.c.l.b16 %v32
    %v104 = vunpack.c.l.b16 %v33
    %v105 = vunpack.c.l.b16 %v34
    %v106 = vunpack.c.l.b16 %v35
    %v107 = vunpack.c.l.b16 %v36
    %v108 = vunpack.c.l.b16 %v37
    %v109 = vunpack.c.l.b16 %v38
    %v110 = vunpack.c.l.b16 %v39
    %v111 = vunpack.c.l.b16 %v40
    %v112 = vunpack.c.l.b16 %v41
    %v113 = vunpack.c.l.b16 %v42
    %v114 = vunpack.c.l.b16 %v43
    %v115 = vunpack.c.l.b16 %v44
    %v116 = vunpack.c.l.b16 %v45
    %v117 = vunpack.c.l.b16 %v46
    %v118 = vunpack.c.l.b16 %v47
    %v119 = vunpack.c.l.b16 %v48
    %v120 = vunpack.c.l.b16 %v49
    %v121 = vunpack.c.l.b16 %v50
    %v122 = vunpack.c.l.b16 %v51
    %v123 = vpack.c.b16 %v92, %v91
    %v124 = vpack.c.b16 %v94, %v93
    %v125 = vpack.c.b16 %v96, %v95
    %v126 = vpack.c.b16 %v98, %v97
    %v127 = vpack.c.b16 %v100, %v99
    %v128 = vpack.c.b16 %v102, %v101
    %v129 = vpack.c.b16 %v104, %v103
    %v130 = vpack.c.b16 %v106, %v105
    %v131 = vpack.c.b16 %v108, %v107
    %v132 = vpack.c.b16 %v110, %v109
    %v133 = vpack.c.b16 %v112, %v111
    %v134 = vpack.c.b16 %v114, %v113
    %v135 = vpack.c.b16 %v116, %v115
    %v136 = vpack.c.b16 %v118, %v117
    %v137 = vpack.c.b16 %v120, %v119
    %v138 = vpack.c.b16 %v122, %v121
    %v145 = vunpack.c.l.b16 %v52
    %v146 = vunpack.c.l.b16 %v53
    %v147 = vunpack.c.l.b16 %v54
    %v148 = vunpack.c.l.b16 %v55
    %v149 = vunpack.c.l.b16 %v56
    %v150 = vunpack.c.l.b16 %v57
    %v151 = vpack.c.b16 %v146, %v145
    %v152 = vpack.c.b16 %v148, %v147
    %v153 = vpack.c.b16 %v150, %v149
    %vm157 = vcmask 392192
    %v159 = vsel %vm157, %v123, 0
    %v162 = vsel %vm157, %v124, 0
    %v165 = vsel %vm157, %v125, 0
    %v168 = vsel %vm157, %v126, 0
    %v171 = vsel %vm157, %v127, 0
    %v174 = vsel %vm157, %v128, 0
    %v177 = vsel %vm157, %v129, 0
    %v180 = vsel %vm157, %v130, 0
    %v183 = vsel %vm157, %v131, 0
    %v186 = vsel %vm157, %v132, 0
    %v189 = vsel %vm157, %v133, 0
    %v192 = vsel %vm157, %v134, 0
    %v195 = vsel %vm157, %v135, 0
    %v198 = vsel %vm157, %v136, 0
    %v201 = vsel %vm157, %v137, 0
    %v204 = vsel %vm157, %v138, 0
    %206 = vmatpush.bf16.msra.mxu0 0
    %207 = vmatpush.bf16.msra.mxu0 0
    %208 = vmatpush.bf16.msra.mxu0 0
    %209 = vmatpush.bf16.msra.mxu0 0
    %210 = vmatpush.bf16.msra.mxu0 0
    %211 = vmatpush.bf16.msra.mxu0 %v153
    %212 = vmatpush.bf16.msra.mxu0 %v152
    %213 = vmatpush.bf16.msra.mxu0 %v151
    %214 = vmatmul.bf16.gmra.mxu0 %v159
    %v215 = vpop.f32.mrf.mxu0
    %v216 = vadd.f32 %v58, %v215
    %v217 = vpop.f32.mrf.mxu0
    %v218 = vadd.f32 %v58, %v217
    %219 = vmatmul.bf16.gmra.mxu0 %v162
    %v220 = vpop.f32.mrf.mxu0
    %v221 = vadd.f32 %v58, %v220
    %v222 = vpop.f32.mrf.mxu0
    %v223 = vadd.f32 %v58, %v222
    %224 = vmatmul.bf16.gmra.mxu0 %v165
    %v225 = vpop.f32.mrf.mxu0
    %v226 = vadd.f32 %v58, %v225
    %v227 = vpop.f32.mrf.mxu0
    %v228 = vadd.f32 %v58, %v227
    %229 = vmatmul.bf16.gmra.mxu0 %v168
    %v230 = vpop.f32.mrf.mxu0
    %v231 = vadd.f32 %v58, %v230
    %v232 = vpop.f32.mrf.mxu0
    %v233 = vadd.f32 %v58, %v232
    %234 = vmatmul.bf16.gmra.mxu0 %v171
    %v235 = vpop.f32.mrf.mxu0
    %v236 = vadd.f32 %v58, %v235
    %v237 = vpop.f32.mrf.mxu0
    %v238 = vadd.f32 %v58, %v237
    %239 = vmatmul.bf16.gmra.mxu0 %v174
    %v240 = vpop.f32.mrf.mxu0
    %v241 = vadd.f32 %v58, %v240
    %v242 = vpop.f32.mrf.mxu0
    %v243 = vadd.f32 %v58, %v242
    %244 = vmatmul.bf16.gmra.mxu0 %v177
    %v245 = vpop.f32.mrf.mxu0
    %v246 = vadd.f32 %v58, %v245
    %v247 = vpop.f32.mrf.mxu0
    %v248 = vadd.f32 %v58, %v247
    %249 = vmatmul.bf16.gmra.mxu0 %v180
    %v250 = vpop.f32.mrf.mxu0
    %v251 = vadd.f32 %v58, %v250
    %v252 = vpop.f32.mrf.mxu0
    %v253 = vadd.f32 %v58, %v252
    %254 = vmatmul.bf16.gmra.mxu0 %v183
    %v255 = vpop.f32.mrf.mxu0
    %v256 = vadd.f32 %v58, %v255
    %v257 = vpop.f32.mrf.mxu0
    %v258 = vadd.f32 %v58, %v257
    %259 = vmatmul.bf16.gmra.mxu0 %v186
    %v260 = vpop.f32.mrf.mxu0
    %v261 = vadd.f32 %v58, %v260
    %v262 = vpop.f32.mrf.mxu0
    %v263 = vadd.f32 %v58, %v262
    %264 = vmatmul.bf16.gmra.mxu0 %v189
    %v265 = vpop.f32.mrf.mxu0
    %v266 = vadd.f32 %v58, %v265
    %v267 = vpop.f32.mrf.mxu0
    %v268 = vadd.f32 %v58, %v267
    %269 = vmatmul.bf16.gmra.mxu0 %v192
    %v270 = vpop.f32.mrf.mxu0
    %v271 = vadd.f32 %v58, %v270
    %v272 = vpop.f32.mrf.mxu0
    %v273 = vadd.f32 %v58, %v272
    %274 = vmatmul.bf16.gmra.mxu0 %v195
    %v275 = vpop.f32.mrf.mxu0
    %v276 = vadd.f32 %v58, %v275
    %v277 = vpop.f32.mrf.mxu0
    %v278 = vadd.f32 %v58, %v277
    %279 = vmatmul.bf16.gmra.mxu0 %v198
    %v280 = vpop.f32.mrf.mxu0
    %v281 = vadd.f32 %v58, %v280
    %v282 = vpop.f32.mrf.mxu0
    %v283 = vadd.f32 %v58, %v282
    %284 = vmatmul.bf16.gmra.mxu0 %v201
    %v285 = vpop.f32.mrf.mxu0
    %v286 = vadd.f32 %v58, %v285
    %v287 = vpop.f32.mrf.mxu0
    %v288 = vadd.f32 %v58, %v287
    %289 = vmatmul.bf16.gmra.mxu0 %v204
    %v290 = vpop.f32.mrf.mxu0
    %v291 = vadd.f32 %v58, %v290
    %v292 = vpop.f32.mrf.mxu0
    %v293 = vadd.f32 %v58, %v292
    %294 = vdwg.mxu0
    %v295 = vmax.f32 %v216, 0.0
    %v296 = vmax.f32 %v218, 0.0
    %v297 = vmax.f32 %v221, 0.0
    %v298 = vmax.f32 %v223, 0.0
    %v299 = vmax.f32 %v226, 0.0
    %v300 = vmax.f32 %v228, 0.0
    %v301 = vmax.f32 %v231, 0.0
    %v302 = vmax.f32 %v233, 0.0
    %v303 = vmax.f32 %v236, 0.0
    %v304 = vmax.f32 %v238, 0.0
    %v305 = vmax.f32 %v241, 0.0
    %v306 = vmax.f32 %v243, 0.0
    %v307 = vmax.f32 %v246, 0.0
    %v308 = vmax.f32 %v248, 0.0
    %v309 = vmax.f32 %v251, 0.0
    %v310 = vmax.f32 %v253, 0.0
    %v311 = vmax.f32 %v256, 0.0
    %v312 = vmax.f32 %v258, 0.0
    %v313 = vmax.f32 %v261, 0.0
    %v314 = vmax.f32 %v263, 0.0
    %v315 = vmax.f32 %v266, 0.0
    %v316 = vmax.f32 %v268, 0.0
    %v317 = vmax.f32 %v271, 0.0
    %v318 = vmax.f32 %v273, 0.0
    %v319 = vmax.f32 %v276, 0.0
    %v320 = vmax.f32 %v278, 0.0
    %v321 = vmax.f32 %v281, 0.0
    %v322 = vmax.f32 %v283, 0.0
    %v323 = vmax.f32 %v286, 0.0
    %v324 = vmax.f32 %v288, 0.0
    %v325 = vmax.f32 %v291, 0.0
    %v326 = vmax.f32 %v293, 0.0
    %v327 = vmax.f32 %v295, %v296
    %v328 = vrot.slane %v327, 4
    %v329 = vmax.f32 %v327, %v328
    %v330 = vrot.slane %v329, 2
    %v331 = vmax.f32 %v329, %v330
    %v332 = vrot.slane %v331, 1
    %v333 = vmax.f32 %v331, %v332
    %v334 = vmax.f32 %v297, %v298
    %v335 = vrot.slane %v334, 4
    %v336 = vmax.f32 %v334, %v335
    %v337 = vrot.slane %v336, 2
    %v338 = vmax.f32 %v336, %v337
    %v339 = vrot.slane %v338, 1
    %v340 = vmax.f32 %v338, %v339
    %v341 = vmax.f32 %v299, %v300
    %v342 = vrot.slane %v341, 4
    %v343 = vmax.f32 %v341, %v342
    %v344 = vrot.slane %v343, 2
    %v345 = vmax.f32 %v343, %v344
    %v346 = vrot.slane %v345, 1
    %v347 = vmax.f32 %v345, %v346
    %v348 = vmax.f32 %v301, %v302
    %v349 = vrot.slane %v348, 4
    %v350 = vmax.f32 %v348, %v349
    %v351 = vrot.slane %v350, 2
    %v352 = vmax.f32 %v350, %v351
    %v353 = vrot.slane %v352, 1
    %v354 = vmax.f32 %v352, %v353
    %v355 = vmax.f32 %v303, %v304
    %v356 = vrot.slane %v355, 4
    %v357 = vmax.f32 %v355, %v356
    %v358 = vrot.slane %v357, 2
    %v359 = vmax.f32 %v357, %v358
    %v360 = vrot.slane %v359, 1
    %v361 = vmax.f32 %v359, %v360
    %v362 = vmax.f32 %v305, %v306
    %v363 = vrot.slane %v362, 4
    %v364 = vmax.f32 %v362, %v363
    %v365 = vrot.slane %v364, 2
    %v366 = vmax.f32 %v364, %v365
    %v367 = vrot.slane %v366, 1
    %v368 = vmax.f32 %v366, %v367
    %v369 = vmax.f32 %v307, %v308
    %v370 = vrot.slane %v369, 4
    %v371 = vmax.f32 %v369, %v370
    %v372 = vrot.slane %v371, 2
    %v373 = vmax.f32 %v371, %v372
    %v374 = vrot.slane %v373, 1
    %v375 = vmax.f32 %v373, %v374
    %v376 = vmax.f32 %v309, %v310
    %v377 = vrot.slane %v376, 4
    %v378 = vmax.f32 %v376, %v377
    %v379 = vrot.slane %v378, 2
    %v380 = vmax.f32 %v378, %v379
    %v381 = vrot.slane %v380, 1
    %v382 = vmax.f32 %v380, %v381
    %v383 = vmax.f32 %v311, %v312
    %v384 = vrot.slane %v383, 4
    %v385 = vmax.f32 %v383, %v384
    %v386 = vrot.slane %v385, 2
    %v387 = vmax.f32 %v385, %v386
    %v388 = vrot.slane %v387, 1
    %v389 = vmax.f32 %v387, %v388
    %v390 = vmax.f32 %v313, %v314
    %v391 = vrot.slane %v390, 4
    %v392 = vmax.f32 %v390, %v391
    %v393 = vrot.slane %v392, 2
    %v394 = vmax.f32 %v392, %v393
    %v395 = vrot.slane %v394, 1
    %v396 = vmax.f32 %v394, %v395
    %v397 = vmax.f32 %v315, %v316
    %v398 = vrot.slane %v397, 4
    %v399 = vmax.f32 %v397, %v398
    %v400 = vrot.slane %v399, 2
    %v401 = vmax.f32 %v399, %v400
    %v402 = vrot.slane %v401, 1
    %v403 = vmax.f32 %v401, %v402
    %v404 = vmax.f32 %v317, %v318
    %v405 = vrot.slane %v404, 4
    %v406 = vmax.f32 %v404, %v405
    %v407 = vrot.slane %v406, 2
    %v408 = vmax.f32 %v406, %v407
    %v409 = vrot.slane %v408, 1
    %v410 = vmax.f32 %v408, %v409
    %v411 = vmax.f32 %v319, %v320
    %v412 = vrot.slane %v411, 4
    %v413 = vmax.f32 %v411, %v412
    %v414 = vrot.slane %v413, 2
    %v415 = vmax.f32 %v413, %v414
    %v416 = vrot.slane %v415, 1
    %v417 = vmax.f32 %v415, %v416
    %v418 = vmax.f32 %v321, %v322
    %v419 = vrot.slane %v418, 4
    %v420 = vmax.f32 %v418, %v419
    %v421 = vrot.slane %v420, 2
    %v422 = vmax.f32 %v420, %v421
    %v423 = vrot.slane %v422, 1
    %v424 = vmax.f32 %v422, %v423
    %v425 = vmax.f32 %v323, %v324
    %v426 = vrot.slane %v425, 4
    %v427 = vmax.f32 %v425, %v426
    %v428 = vrot.slane %v427, 2
    %v429 = vmax.f32 %v427, %v428
    %v430 = vrot.slane %v429, 1
    %v431 = vmax.f32 %v429, %v430
    %v432 = vmax.f32 %v325, %v326
    %v433 = vrot.slane %v432, 4
    %v434 = vmax.f32 %v432, %v433
    %v435 = vrot.slane %v434, 2
    %v436 = vmax.f32 %v434, %v435
    %v437 = vrot.slane %v436, 1
    %v438 = vmax.f32 %v436, %v437
    %v439 = vadd.f32 %v333, 1e-06
    %v440 = vadd.f32 %v340, 1e-06
    %v441 = vadd.f32 %v347, 1e-06
    %v442 = vadd.f32 %v354, 1e-06
    %v443 = vadd.f32 %v361, 1e-06
    %v444 = vadd.f32 %v368, 1e-06
    %v445 = vadd.f32 %v375, 1e-06
    %v446 = vadd.f32 %v382, 1e-06
    %v447 = vadd.f32 %v389, 1e-06
    %v448 = vadd.f32 %v396, 1e-06
    %v449 = vadd.f32 %v403, 1e-06
    %v450 = vadd.f32 %v410, 1e-06
    %v451 = vadd.f32 %v417, 1e-06
    %v452 = vadd.f32 %v424, 1e-06
    %v453 = vadd.f32 %v431, 1e-06
    %v454 = vadd.f32 %v438, 1e-06
    %v455 = vrsqrt.pop %v439
    %v456 = vmul.f32 %v455, %v439
    %v457 = vmul.f32 %v456, %v455
    %v458 = vmul.f32 0.5, %v457
    %v459 = vsub.f32 1.5, %v458
    %v460 = vmul.f32 %v455, %v459
    %v461 = vmul.f32 %v439, %v460
    %vm462 = vcmp.eq.f32.partialorder %v439, inf
    %v463 = vsel %vm462, %v439, %v461
    %vm464 = vcmp.eq.f32.partialorder %v439, 0.0
    %v465 = vand.u32 %v439, 2147483648
    %v466 = vsel %vm464, %v465, %v463
    %v467 = vrsqrt.pop %v440
    %v468 = vmul.f32 %v467, %v440
    %v469 = vmul.f32 %v468, %v467
    %v470 = vmul.f32 0.5, %v469
    %v471 = vsub.f32 1.5, %v470
    %v472 = vmul.f32 %v467, %v471
    %v473 = vmul.f32 %v440, %v472
    %vm474 = vcmp.eq.f32.partialorder %v440, inf
    %v475 = vsel %vm474, %v440, %v473
    %vm476 = vcmp.eq.f32.partialorder %v440, 0.0
    %v477 = vand.u32 %v440, 2147483648
    %v478 = vsel %vm476, %v477, %v475
    %v479 = vrsqrt.pop %v441
    %v480 = vmul.f32 %v479, %v441
    %v481 = vmul.f32 %v480, %v479
    %v482 = vmul.f32 0.5, %v481
    %v483 = vsub.f32 1.5, %v482
    %v484 = vmul.f32 %v479, %v483
    %v485 = vmul.f32 %v441, %v484
    %vm486 = vcmp.eq.f32.partialorder %v441, inf
    %v487 = vsel %vm486, %v441, %v485
    %vm488 = vcmp.eq.f32.partialorder %v441, 0.0
    %v489 = vand.u32 %v441, 2147483648
    %v490 = vsel %vm488, %v489, %v487
    %v491 = vrsqrt.pop %v442
    %v492 = vmul.f32 %v491, %v442
    %v493 = vmul.f32 %v492, %v491
    %v494 = vmul.f32 0.5, %v493
    %v495 = vsub.f32 1.5, %v494
    %v496 = vmul.f32 %v491, %v495
    %v497 = vmul.f32 %v442, %v496
    %vm498 = vcmp.eq.f32.partialorder %v442, inf
    %v499 = vsel %vm498, %v442, %v497
    %vm500 = vcmp.eq.f32.partialorder %v442, 0.0
    %v501 = vand.u32 %v442, 2147483648
    %v502 = vsel %vm500, %v501, %v499
    %v503 = vrsqrt.pop %v443
    %v504 = vmul.f32 %v503, %v443
    %v505 = vmul.f32 %v504, %v503
    %v506 = vmul.f32 0.5, %v505
    %v507 = vsub.f32 1.5, %v506
    %v508 = vmul.f32 %v503, %v507
    %v509 = vmul.f32 %v443, %v508
    %vm510 = vcmp.eq.f32.partialorder %v443, inf
    %v511 = vsel %vm510, %v443, %v509
    %vm512 = vcmp.eq.f32.partialorder %v443, 0.0
    %v513 = vand.u32 %v443, 2147483648
    %v514 = vsel %vm512, %v513, %v511
    %v515 = vrsqrt.pop %v444
    %v516 = vmul.f32 %v515, %v444
    %v517 = vmul.f32 %v516, %v515
    %v518 = vmul.f32 0.5, %v517
    %v519 = vsub.f32 1.5, %v518
    %v520 = vmul.f32 %v515, %v519
    %v521 = vmul.f32 %v444, %v520
    %vm522 = vcmp.eq.f32.partialorder %v444, inf
    %v523 = vsel %vm522, %v444, %v521
    %vm524 = vcmp.eq.f32.partialorder %v444, 0.0
    %v525 = vand.u32 %v444, 2147483648
    %v526 = vsel %vm524, %v525, %v523
    %v527 = vrsqrt.pop %v445
    %v528 = vmul.f32 %v527, %v445
    %v529 = vmul.f32 %v528, %v527
    %v530 = vmul.f32 0.5, %v529
    %v531 = vsub.f32 1.5, %v530
    %v532 = vmul.f32 %v527, %v531
    %v533 = vmul.f32 %v445, %v532
    %vm534 = vcmp.eq.f32.partialorder %v445, inf
    %v535 = vsel %vm534, %v445, %v533
    %vm536 = vcmp.eq.f32.partialorder %v445, 0.0
    %v537 = vand.u32 %v445, 2147483648
    %v538 = vsel %vm536, %v537, %v535
    %v539 = vrsqrt.pop %v446
    %v540 = vmul.f32 %v539, %v446
    %v541 = vmul.f32 %v540, %v539
    %v542 = vmul.f32 0.5, %v541
    %v543 = vsub.f32 1.5, %v542
    %v544 = vmul.f32 %v539, %v543
    %v545 = vmul.f32 %v446, %v544
    %vm546 = vcmp.eq.f32.partialorder %v446, inf
    %v547 = vsel %vm546, %v446, %v545
    %vm548 = vcmp.eq.f32.partialorder %v446, 0.0
    %v549 = vand.u32 %v446, 2147483648
    %v550 = vsel %vm548, %v549, %v547
    %v551 = vrsqrt.pop %v447
    %v552 = vmul.f32 %v551, %v447
    %v553 = vmul.f32 %v552, %v551
    %v554 = vmul.f32 0.5, %v553
    %v555 = vsub.f32 1.5, %v554
    %v556 = vmul.f32 %v551, %v555
    %v557 = vmul.f32 %v447, %v556
    %vm558 = vcmp.eq.f32.partialorder %v447, inf
    %v559 = vsel %vm558, %v447, %v557
    %vm560 = vcmp.eq.f32.partialorder %v447, 0.0
    %v561 = vand.u32 %v447, 2147483648
    %v562 = vsel %vm560, %v561, %v559
    %v563 = vrsqrt.pop %v448
    %v564 = vmul.f32 %v563, %v448
    %v565 = vmul.f32 %v564, %v563
    %v566 = vmul.f32 0.5, %v565
    %v567 = vsub.f32 1.5, %v566
    %v568 = vmul.f32 %v563, %v567
    %v569 = vmul.f32 %v448, %v568
    %vm570 = vcmp.eq.f32.partialorder %v448, inf
    %v571 = vsel %vm570, %v448, %v569
    %vm572 = vcmp.eq.f32.partialorder %v448, 0.0
    %v573 = vand.u32 %v448, 2147483648
    %v574 = vsel %vm572, %v573, %v571
    %v575 = vrsqrt.pop %v449
    %v576 = vmul.f32 %v575, %v449
    %v577 = vmul.f32 %v576, %v575
    %v578 = vmul.f32 0.5, %v577
    %v579 = vsub.f32 1.5, %v578
    %v580 = vmul.f32 %v575, %v579
    %v581 = vmul.f32 %v449, %v580
    %vm582 = vcmp.eq.f32.partialorder %v449, inf
    %v583 = vsel %vm582, %v449, %v581
    %vm584 = vcmp.eq.f32.partialorder %v449, 0.0
    %v585 = vand.u32 %v449, 2147483648
    %v586 = vsel %vm584, %v585, %v583
    %v587 = vrsqrt.pop %v450
    %v588 = vmul.f32 %v587, %v450
    %v589 = vmul.f32 %v588, %v587
    %v590 = vmul.f32 0.5, %v589
    %v591 = vsub.f32 1.5, %v590
    %v592 = vmul.f32 %v587, %v591
    %v593 = vmul.f32 %v450, %v592
    %vm594 = vcmp.eq.f32.partialorder %v450, inf
    %v595 = vsel %vm594, %v450, %v593
    %vm596 = vcmp.eq.f32.partialorder %v450, 0.0
    %v597 = vand.u32 %v450, 2147483648
    %v598 = vsel %vm596, %v597, %v595
    %v599 = vrsqrt.pop %v451
    %v600 = vmul.f32 %v599, %v451
    %v601 = vmul.f32 %v600, %v599
    %v602 = vmul.f32 0.5, %v601
    %v603 = vsub.f32 1.5, %v602
    %v604 = vmul.f32 %v599, %v603
    %v605 = vmul.f32 %v451, %v604
    %vm606 = vcmp.eq.f32.partialorder %v451, inf
    %v607 = vsel %vm606, %v451, %v605
    %vm608 = vcmp.eq.f32.partialorder %v451, 0.0
    %v609 = vand.u32 %v451, 2147483648
    %v610 = vsel %vm608, %v609, %v607
    %v611 = vrsqrt.pop %v452
    %v612 = vmul.f32 %v611, %v452
    %v613 = vmul.f32 %v612, %v611
    %v614 = vmul.f32 0.5, %v613
    %v615 = vsub.f32 1.5, %v614
    %v616 = vmul.f32 %v611, %v615
    %v617 = vmul.f32 %v452, %v616
    %vm618 = vcmp.eq.f32.partialorder %v452, inf
    %v619 = vsel %vm618, %v452, %v617
    %vm620 = vcmp.eq.f32.partialorder %v452, 0.0
    %v621 = vand.u32 %v452, 2147483648
    %v622 = vsel %vm620, %v621, %v619
    %v623 = vrsqrt.pop %v453
    %v624 = vmul.f32 %v623, %v453
    %v625 = vmul.f32 %v624, %v623
    %v626 = vmul.f32 0.5, %v625
    %v627 = vsub.f32 1.5, %v626
    %v628 = vmul.f32 %v623, %v627
    %v629 = vmul.f32 %v453, %v628
    %vm630 = vcmp.eq.f32.partialorder %v453, inf
    %v631 = vsel %vm630, %v453, %v629
    %vm632 = vcmp.eq.f32.partialorder %v453, 0.0
    %v633 = vand.u32 %v453, 2147483648
    %v634 = vsel %vm632, %v633, %v631
    %v635 = vrsqrt.pop %v454
    %v636 = vmul.f32 %v635, %v454
    %v637 = vmul.f32 %v636, %v635
    %v638 = vmul.f32 0.5, %v637
    %v639 = vsub.f32 1.5, %v638
    %v640 = vmul.f32 %v635, %v639
    %v641 = vmul.f32 %v454, %v640
    %vm642 = vcmp.eq.f32.partialorder %v454, inf
    %v643 = vsel %vm642, %v454, %v641
    %vm644 = vcmp.eq.f32.partialorder %v454, 0.0
    %v645 = vand.u32 %v454, 2147483648
    %v646 = vsel %vm644, %v645, %v643
    %v647 = vperm.slane %v19, 0
    %v648 = vmul.f32 %v466, %v647
    %v649 = vmul.f32 %v478, %v647
    %v650 = vmul.f32 %v490, %v647
    %v651 = vmul.f32 %v502, %v647
    %v652 = vmul.f32 %v514, %v647
    %v653 = vmul.f32 %v526, %v647
    %v654 = vmul.f32 %v538, %v647
    %v655 = vmul.f32 %v550, %v647
    %v656 = vmul.f32 %v562, %v647
    %v657 = vmul.f32 %v574, %v647
    %v658 = vmul.f32 %v586, %v647
    %v659 = vmul.f32 %v598, %v647
    %v660 = vmul.f32 %v610, %v647
    %v661 = vmul.f32 %v622, %v647
    %v662 = vmul.f32 %v634, %v647
    %v663 = vmul.f32 %v646, %v647
    %v680 = vrot.slane %v649, 7
    %vm681 = vcmask 1041409
    %v682 = vsel %vm681, %v680, %v648
    %v683 = vrot.slane %v650, 6
    %vm684 = vcmask 1042434
    %v685 = vsel %vm684, %v683, %v682
    %v686 = vrot.slane %v651, 5
    %vm687 = vcmask 1043459
    %v688 = vsel %vm687, %v686, %v685
    %v689 = vrot.slane %v652, 4
    %vm690 = vcmask 1044484
    %v691 = vsel %vm690, %v689, %v688
    %v692 = vrot.slane %v653, 3
    %vm693 = vcmask 1045509
    %v694 = vsel %vm693, %v692, %v691
    %v695 = vrot.slane %v654, 2
    %vm696 = vcmask 1046534
    %v697 = vsel %vm696, %v695, %v694
    %v698 = vrot.slane %v655, 1
    %vm699 = vcmask 1047559
    %v700 = vsel %vm699, %v698, %v697
    %v701 = vrot.slane %v657, 7
    %v702 = vsel %vm681, %v701, %v656
    %v703 = vrot.slane %v658, 6
    %v704 = vsel %vm684, %v703, %v702
    %v705 = vrot.slane %v659, 5
    %v706 = vsel %vm687, %v705, %v704
    %v707 = vrot.slane %v660, 4
    %v708 = vsel %vm690, %v707, %v706
    %v709 = vrot.slane %v661, 3
    %v710 = vsel %vm693, %v709, %v708
    %v711 = vrot.slane %v662, 2
    %v712 = vsel %vm696, %v711, %v710
    %v713 = vrot.slane %v663, 1
    %v714 = vsel %vm699, %v713, %v712
    %717 = vadd.xlane.f32.xlu0 %v700
    %v718 = vpop.xlane.xlu0 %717
    %719 = vadd.xlane.f32.xlu0 %v714
    %v720 = vpop.xlane.xlu0 %719
    %v721 = vmul.f32 %v718, 0.03125
    %v722 = vmul.f32 %v720, 0.03125
    %v725 = vrot.slane %v721, 1
    %v726 = vrot.slane %v721, 2
    %v727 = vrot.slane %v721, 3
    %v728 = vrot.slane %v721, 4
    %v729 = vrot.slane %v721, 5
    %v730 = vrot.slane %v721, 6
    %v731 = vrot.slane %v721, 7
    %v732 = vrot.slane %v722, 1
    %v733 = vrot.slane %v722, 2
    %v734 = vrot.slane %v722, 3
    %v735 = vrot.slane %v722, 4
    %v736 = vrot.slane %v722, 5
    %v737 = vrot.slane %v722, 6
    %v738 = vrot.slane %v722, 7
    %v755 = vsub.f32 %v648, %v721
    %v756 = vsub.f32 %v649, %v725
    %v757 = vsub.f32 %v650, %v726
    %v758 = vsub.f32 %v651, %v727
    %v759 = vsub.f32 %v652, %v728
    %v760 = vsub.f32 %v653, %v729
    %v761 = vsub.f32 %v654, %v730
    %v762 = vsub.f32 %v655, %v731
    %v763 = vsub.f32 %v656, %v722
    %v764 = vsub.f32 %v657, %v732
    %v765 = vsub.f32 %v658, %v733
    %v766 = vsub.f32 %v659, %v734
    %v767 = vsub.f32 %v660, %v735
    %v768 = vsub.f32 %v661, %v736
    %v769 = vsub.f32 %v662, %v737
    %v770 = vsub.f32 %v663, %v738
    %v771 = vmul.f32 %v755, %v647
    %v772 = vmul.f32 %v756, %v647
    %v773 = vmul.f32 %v757, %v647
    %v774 = vmul.f32 %v758, %v647
    %v775 = vmul.f32 %v759, %v647
    %v776 = vmul.f32 %v760, %v647
    %v777 = vmul.f32 %v761, %v647
    %v778 = vmul.f32 %v762, %v647
    %v779 = vmul.f32 %v763, %v647
    %v780 = vmul.f32 %v764, %v647
    %v781 = vmul.f32 %v765, %v647
    %v782 = vmul.f32 %v766, %v647
    %v783 = vmul.f32 %v767, %v647
    %v784 = vmul.f32 %v768, %v647
    %v785 = vmul.f32 %v769, %v647
    %v786 = vmul.f32 %v770, %v647
    %v787 = vmul.f32 %v771, %v771
    %v788 = vmul.f32 %v772, %v772
    %v789 = vmul.f32 %v773, %v773
    %v790 = vmul.f32 %v774, %v774
    %v791 = vmul.f32 %v775, %v775
    %v792 = vmul.f32 %v776, %v776
    %v793 = vmul.f32 %v777, %v777
    %v794 = vmul.f32 %v778, %v778
    %v795 = vmul.f32 %v779, %v779
    %v796 = vmul.f32 %v780, %v780
    %v797 = vmul.f32 %v781, %v781
    %v798 = vmul.f32 %v782, %v782
    %v799 = vmul.f32 %v783, %v783
    %v800 = vmul.f32 %v784, %v784
    %v801 = vmul.f32 %v785, %v785
    %v802 = vmul.f32 %v786, %v786
    %v819 = vrot.slane %v788, 7
    %v820 = vsel %vm681, %v819, %v787
    %v821 = vrot.slane %v789, 6
    %v822 = vsel %vm684, %v821, %v820
    %v823 = vrot.slane %v790, 5
    %v824 = vsel %vm687, %v823, %v822
    %v825 = vrot.slane %v791, 4
    %v826 = vsel %vm690, %v825, %v824
    %v827 = vrot.slane %v792, 3
    %v828 = vsel %vm693, %v827, %v826
    %v829 = vrot.slane %v793, 2
    %v830 = vsel %vm696, %v829, %v828
    %v831 = vrot.slane %v794, 1
    %v832 = vsel %vm699, %v831, %v830
    %v833 = vrot.slane %v796, 7
    %v834 = vsel %vm681, %v833, %v795
    %v835 = vrot.slane %v797, 6
    %v836 = vsel %vm684, %v835, %v834
    %v837 = vrot.slane %v798, 5
    %v838 = vsel %vm687, %v837, %v836
    %v839 = vrot.slane %v799, 4
    %v840 = vsel %vm690, %v839, %v838
    %v841 = vrot.slane %v800, 3
    %v842 = vsel %vm693, %v841, %v840
    %v843 = vrot.slane %v801, 2
    %v844 = vsel %vm696, %v843, %v842
    %v845 = vrot.slane %v802, 1
    %v846 = vsel %vm699, %v845, %v844
    %849 = vadd.xlane.f32.xlu0 %v832
    %v850 = vpop.xlane.xlu0 %849
    %851 = vadd.xlane.f32.xlu0 %v846
    %v852 = vpop.xlane.xlu0 %851
    %v853 = vmul.f32 %v850, 0.03125
    %v854 = vmul.f32 %v852, 0.03125
    %v855 = vadd.f32 %v853, 1e-05
    %v856 = vadd.f32 %v854, 1e-05
    %v857 = vrsqrt.pop %v855
    %v858 = vmul.f32 %v857, %v855
    %v859 = vmul.f32 %v858, %v857
    %v860 = vmul.f32 0.5, %v859
    %v861 = vsub.f32 1.5, %v860
    %v862 = vmul.f32 %v857, %v861
    %vm863 = vweird.f32 %v855
    %vm864 = vweird.f32 %v857
    %vm865 = vmor %vm863, %vm864
    %v866 = vsel %vm865, %v857, %v862
    %v867 = vrsqrt.pop %v856
    %v868 = vmul.f32 %v867, %v856
    %v869 = vmul.f32 %v868, %v867
    %v870 = vmul.f32 0.5, %v869
    %v871 = vsub.f32 1.5, %v870
    %v872 = vmul.f32 %v867, %v871
    %vm873 = vweird.f32 %v856
    %vm874 = vweird.f32 %v867
    %vm875 = vmor %vm873, %vm874
    %v876 = vsel %vm875, %v867, %v872
    %v879 = vrot.slane %v866, 1
    %v880 = vrot.slane %v866, 2
    %v881 = vrot.slane %v866, 3
    %v882 = vrot.slane %v866, 4
    %v883 = vrot.slane %v866, 5
    %v884 = vrot.slane %v866, 6
    %v885 = vrot.slane %v866, 7
    %v886 = vrot.slane %v876, 1
    %v887 = vrot.slane %v876, 2
    %v888 = vrot.slane %v876, 3
    %v889 = vrot.slane %v876, 4
    %v890 = vrot.slane %v876, 5
    %v891 = vrot.slane %v876, 6
    %v892 = vrot.slane %v876, 7
    %v909 = vmul.f32 %v771, %v866
    %v910 = vmul.f32 %v772, %v879
    %v911 = vmul.f32 %v773, %v880
    %v912 = vmul.f32 %v774, %v881
    %v913 = vmul.f32 %v775, %v882
    %v914 = vmul.f32 %v776, %v883
    %v915 = vmul.f32 %v777, %v884
    %v916 = vmul.f32 %v778, %v885
    %v917 = vmul.f32 %v779, %v876
    %v918 = vmul.f32 %v780, %v886
    %v919 = vmul.f32 %v781, %v887
    %v920 = vmul.f32 %v782, %v888
    %v921 = vmul.f32 %v783, %v889
    %v922 = vmul.f32 %v784, %v890
    %v923 = vmul.f32 %v785, %v891
    %v924 = vmul.f32 %v786, %v892
    %v925 = vperm.slane %v17, 0
    %v926 = vmul.f32 %v909, %v925
    %v927 = vmul.f32 %v910, %v925
    %v928 = vmul.f32 %v911, %v925
    %v929 = vmul.f32 %v912, %v925
    %v930 = vmul.f32 %v913, %v925
    %v931 = vmul.f32 %v914, %v925
    %v932 = vmul.f32 %v915, %v925
    %v933 = vmul.f32 %v916, %v925
    %v934 = vmul.f32 %v917, %v925
    %v935 = vmul.f32 %v918, %v925
    %v936 = vmul.f32 %v919, %v925
    %v937 = vmul.f32 %v920, %v925
    %v938 = vmul.f32 %v921, %v925
    %v939 = vmul.f32 %v922, %v925
    %v940 = vmul.f32 %v923, %v925
    %v941 = vmul.f32 %v924, %v925
    %v942 = vperm.slane %v18, 0
    %v943 = vadd.f32 %v926, %v942
    %v944 = vadd.f32 %v927, %v942
    %v945 = vadd.f32 %v928, %v942
    %v946 = vadd.f32 %v929, %v942
    %v947 = vadd.f32 %v930, %v942
    %v948 = vadd.f32 %v931, %v942
    %v949 = vadd.f32 %v932, %v942
    %v950 = vadd.f32 %v933, %v942
    %v951 = vadd.f32 %v934, %v942
    %v952 = vadd.f32 %v935, %v942
    %v953 = vadd.f32 %v936, %v942
    %v954 = vadd.f32 %v937, %v942
    %v955 = vadd.f32 %v938, %v942
    %v956 = vadd.f32 %v939, %v942
    %v957 = vadd.f32 %v940, %v942
    %v958 = vadd.f32 %v941, %v942
    %v975 = vrot.slane %v944, 7
    %v976 = vsel %vm681, %v975, %v943
    %v977 = vrot.slane %v945, 6
    %v978 = vsel %vm684, %v977, %v976
    %v979 = vrot.slane %v946, 5
    %v980 = vsel %vm687, %v979, %v978
    %v981 = vrot.slane %v947, 4
    %v982 = vsel %vm690, %v981, %v980
    %v983 = vrot.slane %v948, 3
    %v984 = vsel %vm693, %v983, %v982
    %v985 = vrot.slane %v949, 2
    %v986 = vsel %vm696, %v985, %v984
    %v987 = vrot.slane %v950, 1
    %v988 = vsel %vm699, %v987, %v986
    %v989 = vrot.slane %v952, 7
    %v990 = vsel %vm681, %v989, %v951
    %v991 = vrot.slane %v953, 6
    %v992 = vsel %vm684, %v991, %v990
    %v993 = vrot.slane %v954, 5
    %v994 = vsel %vm687, %v993, %v992
    %v995 = vrot.slane %v955, 4
    %v996 = vsel %vm690, %v995, %v994
    %v997 = vrot.slane %v956, 3
    %v998 = vsel %vm693, %v997, %v996
    %v999 = vrot.slane %v957, 2
    %v1000 = vsel %vm696, %v999, %v998
    %v1001 = vrot.slane %v958, 1
    %v1002 = vsel %vm699, %v1001, %v1000
    %1005 = vst [vmem:[#allocation2] sm:$0xff] %v988
    %1006 = vst [vmem:[#allocation2 + $0x8] sm:$0xff] %v1002
    // Predicated region
    $region14: #{tpu_custom_call.1} parent=1 // pred_check
      _
    $region15: #{tpu_custom_call.1} parent=1 // pred_check_branch
      %1008 = sbr.rel (0) target = $region17
    $region16: #{tpu_custom_call.1} parent=1 // pred_region
      %1010 = vsyncadd [#allocation3], 0
      %s1011 = sshll.u32 [#allocation2], 4
      %s1012 = int_to_ptr.vmem [resolvable:$true] %s1011
      %s1013 = sshll.u32 %s3, 4
      %s1014 = int_to_ptr.hbm [resolvable:$true] %s1013
      %1019 = dma.vmem_to_hbm [thread:$0]  %s1012, 256, %s1014, [#allocation3], 128, 128, 8
    $region17: #{tpu_custom_call.1} parent=1 // pred_fallthru
      _
    // Predicated region
    $region18: #{tpu_custom_call.1} parent=1 // pred_check
      _
    $region19: #{tpu_custom_call.1} parent=1 // pred_check_branch
      %1021 = sbr.rel (0) target = $region21
    $region20: #{tpu_custom_call.1} parent=1 // pred_region
      %1023 = dma.done [#allocation3], 256
    $region21: #{tpu_custom_call.1} parent=1 // pred_fallthru
      _
    %1024 = vsyncpa [#allocation3], 1

</llo_original>
